<compile_context>
chip_gen: v6e
topology: v6e:2x2x1
jax: 0.10.0
libtpu: 0.0.40
codegen_flags: <defaults>
</compile_context>

<pallas_src>
import functools

import jax
import jax.numpy as jnp
from jax.experimental import pallas as pl
from jax.experimental.pallas import tpu as pltpu

# Standard constants used by the Kaggle loss-function library this file mirrors.
ALPHA = 0.5
BETA = 0.5
GAMMA = 1.0

_LANE = 128       # TPU lane width
_SUB = 256        # rows per in-kernel sub-chunk (128 KiB f32 per operand)
_TM_MAX = 4096    # max sublane rows per grid step (2 MiB f32 per input block)


def _num_parallel_cores():
    """2 on dual-TensorCore chips (v7x); 1 on single-TC chips (v5e/v6e)."""
    try:
        kind = jax.devices()[0].device_kind.lower()
    except Exception:
        return 1
    return 2 if "v7" in kind else 1


def _ftl_sums_kernel(x_ref, t_ref, acc_ref, *, rows, tm, sub, steps_per_core):
    """Accumulate [sum(sigmoid(x)*t), sum(sigmoid(x)), sum(t)] into (3, 8, 128)."""
    c = pl.program_id(0)          # "parallel" (core) axis
    i = pl.program_id(1)          # "arbitrary" reduction axis

    @pl.when(i == 0)
    def _():
        acc_ref[...] = jnp.zeros_like(acc_ref)

    # Logical (un-clamped) block index and first row of this tile.  Redundant
    # clamped steps and the partial last block are zeroed by the masked path.
    blk = c * steps_per_core + i
    row_off = blk * tm
    n_sub = tm // sub

    def accumulate(masked):
        zero = jnp.zeros((8, _LANE), jnp.float32)
        pt_a, p_a, t_a = zero, zero, zero
        # Fully-unrolled sub-chunk loop: live intermediates are (sub, 128)
        # slabs instead of full (tm, 128) temporaries.
        for j in range(n_sub):
            r0 = j * sub
            xs = x_ref[pl.ds(r0, sub), :].astype(jnp.float32)
            ts = t_ref[pl.ds(r0, sub), :].astype(jnp.float32)
            # sigmoid(x) = 0.5 * tanh(0.5 * x) + 0.5  -> single EUP op.
            p = 0.5 * jnp.tanh(0.5 * xs) + 0.5
            if masked:
                rid = jax.lax.broadcasted_iota(jnp.int32, (sub, _LANE), 0)
                valid = (row_off + r0 + rid) < rows
                p = jnp.where(valid, p, 0.0)
                ts = jnp.where(valid, ts, 0.0)
            # Reduce each (sub, 128) slab to a vreg-shaped (8, 128) partial
            # with VPU adds only (no cross-lane XLU work).
            pt_a = pt_a + (p * ts).reshape(sub // 8, 8, _LANE).sum(axis=0)
            p_a = p_a + p.reshape(sub // 8, 8, _LANE).sum(axis=0)
            t_a = t_a + ts.reshape(sub // 8, 8, _LANE).sum(axis=0)
        acc_ref[0] += pt_a
        acc_ref[1] += p_a
        acc_ref[2] += t_a

    # Fast path for bulk tiles: no iota / compare / select on the VPU.
    @pl.when(row_off + tm <= rows)
    def _fast():
        accumulate(masked=False)

    # Masked path only for the tile containing the row tail and for the
    # (at most one) clamped redundant step when total_steps % ncores != 0.
    @pl.when(row_off + tm > rows)
    def _tail():
        accumulate(masked=True)


@functools.partial(jax.jit, static_argnames=("smooth", "alpha", "beta", "gamma"))
def focal_tversky_loss(inputs, targets, smooth=1.0, alpha=ALPHA, beta=BETA, gamma=GAMMA):
    """Exact forward semantics of FocalTverskyLoss.forward (float32 scalar)."""
    x = inputs.reshape(-1)
    t = targets.reshape(-1)
    n = x.shape[0]

    # Sublane granularity: 8 for 4-byte dtypes, 16 for bf16/fp16, 32 for int8.
    sub_mult = max(8, 32 // min(x.dtype.itemsize, t.dtype.itemsize))

    rows = n // _LANE              # full 128-lane rows
    if rows < sub_mult:            # too small to be worth a kernel launch
        rows = 0
    n_main = rows * _LANE
    rem = n - n_main               # trailing elements handled in pure JAX

    TP = jnp.float32(0.0)
    sum_p = jnp.float32(0.0)
    sum_t = jnp.float32(0.0)

    if rows > 0:
        # Lane-dense 2-D view of the aligned bulk -- no full-array pad copy.
        if rem:
            xb = x[:n_main]
            tb = t[:n_main]
        else:
            xb, tb = x, t
        x2 = xb.reshape(rows, _LANE)
        t2 = tb.reshape(rows, _LANE)

        # Row-tile per grid step: round DOWN to the sub-chunk granularity so a
        # block never exceeds the array extent except as a normal partial
        # boundary block (handled by the masked path).
        if rows <= _SUB:
            tm = (rows // sub_mult) * sub_mult
            sub = tm
        else:
            tm = min(_TM_MAX, (rows // _SUB) * _SUB)
            sub = _SUB

        total_steps = -(-rows // tm)
        ncores = min(_num_parallel_cores(), total_steps)
        steps_per_core = -(-total_steps // ncores)
        last_blk = total_steps - 1

        def in_map(c, i):
            # Clamp redundant trailing steps in bounds; their contribution is
            # fully masked out inside the kernel.
            return (jnp.minimum(c * steps_per_core + i, last_blk), 0)

        kernel = functools.partial(
            _ftl_sums_kernel, rows=rows, tm=tm, sub=sub,
            steps_per_core=steps_per_core)

        out_bytes = ncores * 3 * 8 * _LANE * 4
        acc = pl.pallas_call(
            kernel,
            out_shape=jax.ShapeDtypeStruct((ncores, 3, 8, _LANE), jnp.float32),
            grid_spec=pltpu.PrefetchScalarGridSpec(
                num_scalar_prefetch=0,
                grid=(ncores, steps_per_core),
                in_specs=[
                    pl.BlockSpec((tm, _LANE), in_map),
                    pl.BlockSpec((tm, _LANE), in_map),
                ],
                out_specs=pl.BlockSpec((None, 3, 8, _LANE),
                                       lambda c, i: (c, 0, 0, 0)),
            ),
            compiler_params=pltpu.CompilerParams(
                dimension_semantics=("parallel", "arbitrary"),
                vmem_limit_bytes=32 * 1024 * 1024,
            ),
            cost_estimate=pl.CostEstimate(
                flops=8 * n_main,
                transcendentals=n_main,
                bytes_accessed=int(x2.size * x2.dtype.itemsize
                                   + t2.size * t2.dtype.itemsize
                                   + out_bytes),
            ),
        )(x2, t2)

        sums = jnp.sum(acc, axis=(0, 2, 3))   # (3,): [TP, sum(p), sum(t)]
        TP, sum_p, sum_t = sums[0], sums[1], sums[2]

    if rem:
        # Tiny tail (<128 elems, or a tiny whole input): trivial pure-JAX
        # reduction instead of padding/copying the whole flattened tensor.
        x_tail = x[n_main:].astype(jnp.float32)
        t_tail = t[n_main:].astype(jnp.float32)
        p_tail = jax.nn.sigmoid(x_tail)
        TP = TP + jnp.sum(p_tail * t_tail)
        sum_p = sum_p + jnp.sum(p_tail)
        sum_t = sum_t + jnp.sum(t_tail)

    FP = sum_p - TP                            # ((1 - targets) * p).sum()
    FN = sum_t - TP                            # (targets * (1 - p)).sum()
    tversky = (TP + smooth) / (TP + alpha * FP + beta * FN + smooth)
    return (1.0 - tversky) ** gamma


if __name__ == "__main__":
    key = jax.random.PRNGKey(0)
    k_x, k_t = jax.random.split(key)

    # NCHW, as the PyTorch module would receive from a 2D U-Net head.
    B, C, H, W = 2, 4, 16, 16
    logits = jax.random.normal(k_x, (B, C, H, W), dtype=jnp.float32)
    targets = jax.random.bernoulli(k_t, p=0.3, shape=(B, C, H, W)).astype(jnp.float32)

    loss = focal_tversky_loss(logits, targets)
    loss = jax.block_until_ready(loss)

    # Pure-JAX reference (exactly the PyTorch math) for a sanity check.
    p = jax.nn.sigmoid(logits).reshape(-1)
    t = targets.reshape(-1)
    TP = jnp.sum(p * t)
    FP = jnp.sum((1.0 - t) * p)
    FN = jnp.sum(t * (1.0 - p))
    ref = (1.0 - (TP + 1.0) / (TP + ALPHA * FP + BETA * FN + 1.0)) ** GAMMA
    assert jnp.allclose(loss, ref, rtol=1e-4, atol=1e-5), (loss, ref)

    print("KERNEL_OK")
</pallas_src>

<mosaic_0001>
module attributes {stable_mosaic.version = 11 : i64} {
  func.func @_ftl_sums_kernel(%arg0: i32, %arg1: i32, %arg2: memref<16x128xf32, #tpu.memory_space<vmem>>, %arg3: memref<16x128xf32, #tpu.memory_space<vmem>>, %arg4: memref<1x3x8x128xf32, #tpu.memory_space<vmem>>) attributes {dimension_semantics = [#tpu.dimension_semantics<parallel>, #tpu.dimension_semantics<arbitrary>], iteration_bounds = array<i64: 1, 1>, scalar_prefetch = 0 : i64, scratch_operands = 0 : i64, tpu.core_type = #tpu.core_type<tc>, window_params = [{transform_indices = @transform_0, window_bounds = array<i64: 16, 128>}, {transform_indices = @transform_1, window_bounds = array<i64: 16, 128>}, {transform_indices = @transform_2, window_bounds = array<i64: 1, 3, 8, 128>}]} {
    %c0_i32 = arith.constant 0 : i32
    %0 = arith.cmpi eq, %arg1, %c0_i32 : i32
    %1 = arith.extui %0 : i1 to i32
    %c0_i32_0 = arith.constant 0 : i32
    %2 = arith.cmpi ne, %1, %c0_i32_0 : i32
    scf.if %2 {
      %cst = arith.constant 0.000000e+00 : f32
      %14 = vector.broadcast %cst : f32 to vector<3x8x128xf32>
      %c0 = arith.constant 0 : index
      %c0_7 = arith.constant 0 : index
      %c0_8 = arith.constant 0 : index
      %c0_9 = arith.constant 0 : index
      %15 = vector.load %arg4[%c0, %c0_7, %c0_8, %c0_9] : memref<1x3x8x128xf32, #tpu.memory_space<vmem>>, vector<1x3x8x128xf32>
      %16 = vector.shape_cast %15 : vector<1x3x8x128xf32> to vector<3x8x128xf32>
      %17 = vector.shape_cast %14 : vector<3x8x128xf32> to vector<1x3x8x128xf32>
      tpu.vector_store %arg4[%c0, %c0_7, %c0_8, %c0_9], %17 {strides = array<i32>} : memref<1x3x8x128xf32, #tpu.memory_space<vmem>>, vector<1x3x8x128xf32>,
    } else {
    }
    %c1_i32 = arith.constant 1 : i32
    %3 = arith.muli %arg0, %c1_i32 : i32
    %4 = arith.addi %3, %arg1 : i32
    %c16_i32 = arith.constant 16 : i32
    %5 = arith.muli %4, %c16_i32 : i32
    %c16_i32_1 = arith.constant 16 : i32
    %6 = arith.addi %5, %c16_i32_1 : i32
    %c16_i32_2 = arith.constant 16 : i32
    %7 = arith.cmpi sle, %6, %c16_i32_2 : i32
    %8 = arith.extui %7 : i1 to i32
    %c0_i32_3 = arith.constant 0 : i32
    %9 = arith.cmpi ne, %8, %c0_i32_3 : i32
    scf.if %9 {
      %cst = arith.constant 0.000000e+00 : f32
      %14 = vector.broadcast %cst : f32 to vector<8x128xf32>
      %c0 = arith.constant 0 : index
      %c0_7 = arith.constant 0 : index
      %15 = vector.load %arg2[%c0, %c0_7] : memref<16x128xf32, #tpu.memory_space<vmem>>, vector<16x128xf32>
      %c0_8 = arith.constant 0 : index
      %c0_9 = arith.constant 0 : index
      %16 = vector.load %arg3[%c0_8, %c0_9] : memref<16x128xf32, #tpu.memory_space<vmem>>, vector<16x128xf32>
      %cst_10 = arith.constant 5.000000e-01 : f32
      %17 = vector.broadcast %cst_10 : f32 to vector<16x128xf32>
      %18 = arith.mulf %17, %15 : vector<16x128xf32>
      %19 = math.tanh %18 : vector<16x128xf32>
      %cst_11 = arith.constant 5.000000e-01 : f32
      %20 = vector.broadcast %cst_11 : f32 to vector<16x128xf32>
      %21 = arith.mulf %20, %19 : vector<16x128xf32>
      %cst_12 = arith.constant 5.000000e-01 : f32
      %22 = vector.broadcast %cst_12 : f32 to vector<16x128xf32>
      %23 = arith.addf %21, %22 : vector<16x128xf32>
      %24 = arith.mulf %23, %16 : vector<16x128xf32>
      %25 = vector.shape_cast %24 : vector<16x128xf32> to vector<2x8x128xf32>
      %cst_13 = arith.constant dense<0.000000e+00> : vector<8x128xf32>
      %26 = vector.multi_reduction <add>, %25, %cst_13 [0] : vector<2x8x128xf32> to vector<8x128xf32>
      %27 = arith.addf %14, %26 : vector<8x128xf32>
      %28 = vector.shape_cast %23 : vector<16x128xf32> to vector<2x8x128xf32>
      %cst_14 = arith.constant dense<0.000000e+00> : vector<8x128xf32>
      %29 = vector.multi_reduction <add>, %28, %cst_14 [0] : vector<2x8x128xf32> to vector<8x128xf32>
      %30 = arith.addf %14, %29 : vector<8x128xf32>
      %31 = vector.shape_cast %16 : vector<16x128xf32> to vector<2x8x128xf32>
      %cst_15 = arith.constant dense<0.000000e+00> : vector<8x128xf32>
      %32 = vector.multi_reduction <add>, %31, %cst_15 [0] : vector<2x8x128xf32> to vector<8x128xf32>
      %33 = arith.addf %14, %32 : vector<8x128xf32>
      %c0_16 = arith.constant 0 : index
      %c0_17 = arith.constant 0 : index
      %c0_18 = arith.constant 0 : index
      %c0_19 = arith.constant 0 : index
      %34 = vector.load %arg4[%c0_16, %c0_17, %c0_18, %c0_19] : memref<1x3x8x128xf32, #tpu.memory_space<vmem>>, vector<1x1x8x128xf32>
      %35 = vector.shape_cast %34 : vector<1x1x8x128xf32> to vector<8x128xf32>
      %36 = arith.addf %35, %27 : vector<8x128xf32>
      %c0_20 = arith.constant 0 : index
      %c0_21 = arith.constant 0 : index
      %c0_22 = arith.constant 0 : index
      %c0_23 = arith.constant 0 : index
      %37 = vector.load %arg4[%c0_20, %c0_21, %c0_22, %c0_23] : memref<1x3x8x128xf32, #tpu.memory_space<vmem>>, vector<1x1x8x128xf32>
      %38 = vector.shape_cast %37 : vector<1x1x8x128xf32> to vector<8x128xf32>
      %39 = vector.shape_cast %36 : vector<8x128xf32> to vector<1x1x8x128xf32>
      tpu.vector_store %arg4[%c0_20, %c0_21, %c0_22, %c0_23], %39 {strides = array<i32>} : memref<1x3x8x128xf32, #tpu.memory_space<vmem>>, vector<1x1x8x128xf32>,
      %c0_24 = arith.constant 0 : index
      %c1 = arith.constant 1 : index
      %c0_25 = arith.constant 0 : index
      %c0_26 = arith.constant 0 : index
      %40 = vector.load %arg4[%c0_24, %c1, %c0_25, %c0_26] : memref<1x3x8x128xf32, #tpu.memory_space<vmem>>, vector<1x1x8x128xf32>
      %41 = vector.shape_cast %40 : vector<1x1x8x128xf32> to vector<8x128xf32>
      %42 = arith.addf %41, %30 : vector<8x128xf32>
      %c0_27 = arith.constant 0 : index
      %c1_28 = arith.constant 1 : index
      %c0_29 = arith.constant 0 : index
      %c0_30 = arith.constant 0 : index
      %43 = vector.load %arg4[%c0_27, %c1_28, %c0_29, %c0_30] : memref<1x3x8x128xf32, #tpu.memory_space<vmem>>, vector<1x1x8x128xf32>
      %44 = vector.shape_cast %43 : vector<1x1x8x128xf32> to vector<8x128xf32>
      %45 = vector.shape_cast %42 : vector<8x128xf32> to vector<1x1x8x128xf32>
      tpu.vector_store %arg4[%c0_27, %c1_28, %c0_29, %c0_30], %45 {strides = array<i32>} : memref<1x3x8x128xf32, #tpu.memory_space<vmem>>, vector<1x1x8x128xf32>,
      %c0_31 = arith.constant 0 : index
      %c2 = arith.constant 2 : index
      %c0_32 = arith.constant 0 : index
      %c0_33 = arith.constant 0 : index
      %46 = vector.load %arg4[%c0_31, %c2, %c0_32, %c0_33] : memref<1x3x8x128xf32, #tpu.memory_space<vmem>>, vector<1x1x8x128xf32>
      %47 = vector.shape_cast %46 : vector<1x1x8x128xf32> to vector<8x128xf32>
      %48 = arith.addf %47, %33 : vector<8x128xf32>
      %c0_34 = arith.constant 0 : index
      %c2_35 = arith.constant 2 : index
      %c0_36 = arith.constant 0 : index
      %c0_37 = arith.constant 0 : index
      %49 = vector.load %arg4[%c0_34, %c2_35, %c0_36, %c0_37] : memref<1x3x8x128xf32, #tpu.memory_space<vmem>>, vector<1x1x8x128xf32>
      %50 = vector.shape_cast %49 : vector<1x1x8x128xf32> to vector<8x128xf32>
      %51 = vector.shape_cast %48 : vector<8x128xf32> to vector<1x1x8x128xf32>
      tpu.vector_store %arg4[%c0_34, %c2_35, %c0_36, %c0_37], %51 {strides = array<i32>} : memref<1x3x8x128xf32, #tpu.memory_space<vmem>>, vector<1x1x8x128xf32>,
    } else {
    }
    %c16_i32_4 = arith.constant 16 : i32
    %10 = arith.addi %5, %c16_i32_4 : i32
    %c16_i32_5 = arith.constant 16 : i32
    %11 = arith.cmpi sgt, %10, %c16_i32_5 : i32
    %12 = arith.extui %11 : i1 to i32
    %c0_i32_6 = arith.constant 0 : i32
    %13 = arith.cmpi ne, %12, %c0_i32_6 : i32
    scf.if %13 {
      %cst = arith.constant 0.000000e+00 : f32
      %14 = vector.broadcast %cst : f32 to vector<8x128xf32>
      %c0 = arith.constant 0 : index
      %c0_7 = arith.constant 0 : index
      %15 = vector.load %arg2[%c0, %c0_7] : memref<16x128xf32, #tpu.memory_space<vmem>>, vector<16x128xf32>
      %c0_8 = arith.constant 0 : index
      %c0_9 = arith.constant 0 : index
      %16 = vector.load %arg3[%c0_8, %c0_9] : memref<16x128xf32, #tpu.memory_space<vmem>>, vector<16x128xf32>
      %cst_10 = arith.constant 5.000000e-01 : f32
      %17 = vector.broadcast %cst_10 : f32 to vector<16x128xf32>
      %18 = arith.mulf %17, %15 : vector<16x128xf32>
      %19 = math.tanh %18 : vector<16x128xf32>
      %cst_11 = arith.constant 5.000000e-01 : f32
      %20 = vector.broadcast %cst_11 : f32 to vector<16x128xf32>
      %21 = arith.mulf %20, %19 : vector<16x128xf32>
      %cst_12 = arith.constant 5.000000e-01 : f32
      %22 = vector.broadcast %cst_12 : f32 to vector<16x128xf32>
      %23 = arith.addf %21, %22 : vector<16x128xf32>
      %24 = tpu.iota {dimensions = array<i32: 0>} : vector<16x128xi32>
      %c0_i32_13 = arith.constant 0 : i32
      %25 = arith.addi %5, %c0_i32_13 : i32
      %26 = vector.broadcast %25 : i32 to vector<16x128xi32>
      %27 = arith.addi %26, %24 : vector<16x128xi32>
      %c16_i32_14 = arith.constant 16 : i32
      %28 = vector.broadcast %c16_i32_14 : i32 to vector<16x128xi32>
      %29 = arith.cmpi slt, %27, %28 : vector<16x128xi32>
      %cst_15 = arith.constant 0.000000e+00 : f32
      %30 = vector.broadcast %cst_15 : f32 to vector<16x128xf32>
      %31 = arith.select %29, %23, %30 : vector<16x128xi1>, vector<16x128xf32>
      %cst_16 = arith.constant 0.000000e+00 : f32
      %32 = vector.broadcast %cst_16 : f32 to vector<16x128xf32>
      %33 = arith.select %29, %16, %32 : vector<16x128xi1>, vector<16x128xf32>
      %34 = arith.mulf %31, %33 : vector<16x128xf32>
      %35 = vector.shape_cast %34 : vector<16x128xf32> to vector<2x8x128xf32>
      %cst_17 = arith.constant dense<0.000000e+00> : vector<8x128xf32>
      %36 = vector.multi_reduction <add>, %35, %cst_17 [0] : vector<2x8x128xf32> to vector<8x128xf32>
      %37 = arith.addf %14, %36 : vector<8x128xf32>
      %38 = vector.shape_cast %31 : vector<16x128xf32> to vector<2x8x128xf32>
      %cst_18 = arith.constant dense<0.000000e+00> : vector<8x128xf32>
      %39 = vector.multi_reduction <add>, %38, %cst_18 [0] : vector<2x8x128xf32> to vector<8x128xf32>
      %40 = arith.addf %14, %39 : vector<8x128xf32>
      %41 = vector.shape_cast %33 : vector<16x128xf32> to vector<2x8x128xf32>
      %cst_19 = arith.constant dense<0.000000e+00> : vector<8x128xf32>
      %42 = vector.multi_reduction <add>, %41, %cst_19 [0] : vector<2x8x128xf32> to vector<8x128xf32>
      %43 = arith.addf %14, %42 : vector<8x128xf32>
      %c0_20 = arith.constant 0 : index
      %c0_21 = arith.constant 0 : index
      %c0_22 = arith.constant 0 : index
      %c0_23 = arith.constant 0 : index
      %44 = vector.load %arg4[%c0_20, %c0_21, %c0_22, %c0_23] : memref<1x3x8x128xf32, #tpu.memory_space<vmem>>, vector<1x1x8x128xf32>
      %45 = vector.shape_cast %44 : vector<1x1x8x128xf32> to vector<8x128xf32>
      %46 = arith.addf %45, %37 : vector<8x128xf32>
      %c0_24 = arith.constant 0 : index
      %c0_25 = arith.constant 0 : index
      %c0_26 = arith.constant 0 : index
      %c0_27 = arith.constant 0 : index
      %47 = vector.load %arg4[%c0_24, %c0_25, %c0_26, %c0_27] : memref<1x3x8x128xf32, #tpu.memory_space<vmem>>, vector<1x1x8x128xf32>
      %48 = vector.shape_cast %47 : vector<1x1x8x128xf32> to vector<8x128xf32>
      %49 = vector.shape_cast %46 : vector<8x128xf32> to vector<1x1x8x128xf32>
      tpu.vector_store %arg4[%c0_24, %c0_25, %c0_26, %c0_27], %49 {strides = array<i32>} : memref<1x3x8x128xf32, #tpu.memory_space<vmem>>, vector<1x1x8x128xf32>,
      %c0_28 = arith.constant 0 : index
      %c1 = arith.constant 1 : index
      %c0_29 = arith.constant 0 : index
      %c0_30 = arith.constant 0 : index
      %50 = vector.load %arg4[%c0_28, %c1, %c0_29, %c0_30] : memref<1x3x8x128xf32, #tpu.memory_space<vmem>>, vector<1x1x8x128xf32>
      %51 = vector.shape_cast %50 : vector<1x1x8x128xf32> to vector<8x128xf32>
      %52 = arith.addf %51, %40 : vector<8x128xf32>
      %c0_31 = arith.constant 0 : index
      %c1_32 = arith.constant 1 : index
      %c0_33 = arith.constant 0 : index
      %c0_34 = arith.constant 0 : index
      %53 = vector.load %arg4[%c0_31, %c1_32, %c0_33, %c0_34] : memref<1x3x8x128xf32, #tpu.memory_space<vmem>>, vector<1x1x8x128xf32>
      %54 = vector.shape_cast %53 : vector<1x1x8x128xf32> to vector<8x128xf32>
      %55 = vector.shape_cast %52 : vector<8x128xf32> to vector<1x1x8x128xf32>
      tpu.vector_store %arg4[%c0_31, %c1_32, %c0_33, %c0_34], %55 {strides = array<i32>} : memref<1x3x8x128xf32, #tpu.memory_space<vmem>>, vector<1x1x8x128xf32>,
      %c0_35 = arith.constant 0 : index
      %c2 = arith.constant 2 : index
      %c0_36 = arith.constant 0 : index
      %c0_37 = arith.constant 0 : index
      %56 = vector.load %arg4[%c0_35, %c2, %c0_36, %c0_37] : memref<1x3x8x128xf32, #tpu.memory_space<vmem>>, vector<1x1x8x128xf32>
      %57 = vector.shape_cast %56 : vector<1x1x8x128xf32> to vector<8x128xf32>
      %58 = arith.addf %57, %43 : vector<8x128xf32>
      %c0_38 = arith.constant 0 : index
      %c2_39 = arith.constant 2 : index
      %c0_40 = arith.constant 0 : index
      %c0_41 = arith.constant 0 : index
      %59 = vector.load %arg4[%c0_38, %c2_39, %c0_40, %c0_41] : memref<1x3x8x128xf32, #tpu.memory_space<vmem>>, vector<1x1x8x128xf32>
      %60 = vector.shape_cast %59 : vector<1x1x8x128xf32> to vector<8x128xf32>
      %61 = vector.shape_cast %58 : vector<8x128xf32> to vector<1x1x8x128xf32>
      tpu.vector_store %arg4[%c0_38, %c2_39, %c0_40, %c0_41], %61 {strides = array<i32>} : memref<1x3x8x128xf32, #tpu.memory_space<vmem>>, vector<1x1x8x128xf32>,
    } else {
    }
    return
  }
  func.func @transform_0(%arg0: i32, %arg1: i32) -> (i32, i32) {
    %c1_i32 = arith.constant 1 : i32
    %0 = arith.muli %arg0, %c1_i32 : i32
    %1 = arith.addi %0, %arg1 : i32
    %c0_i32 = arith.constant 0 : i32
    %2 = arith.minsi %1, %c0_i32 : i32
    %c0_i32_0 = arith.constant 0 : i32
    %c0_i32_1 = arith.constant 0 : i32
    return %2, %c0_i32_0 : i32, i32
  }
  func.func @transform_1(%arg0: i32, %arg1: i32) -> (i32, i32) {
    %c1_i32 = arith.constant 1 : i32
    %0 = arith.muli %arg0, %c1_i32 : i32
    %1 = arith.addi %0, %arg1 : i32
    %c0_i32 = arith.constant 0 : i32
    %2 = arith.minsi %1, %c0_i32 : i32
    %c0_i32_0 = arith.constant 0 : i32
    %c0_i32_1 = arith.constant 0 : i32
    return %2, %c0_i32_0 : i32, i32
  }
  func.func @transform_2(%arg0: i32, %arg1: i32) -> (i32, i32, i32, i32) {
    %c0_i32 = arith.constant 0 : i32
    %c0_i32_0 = arith.constant 0 : i32
    %c0_i32_1 = arith.constant 0 : i32
    %c0_i32_2 = arith.constant 0 : i32
    return %arg0, %c0_i32, %c0_i32_0, %c0_i32_1 : i32, i32, i32, i32
  }
}

</mosaic_0001>

<llo_original>
// kernel: focal_tversky_loss.1
$region0: #{focal_tversky_loss.1}
  #allocation0 [shape = 'u32[]', space=smem, size = 0x4, offset = 0x4, fixed_abs, tag = 'smem constant byte address 0x4 - core index']
  #allocation1 [shape = 'u32[144,128]{1,0:T(1,128)}', space=vmem, size = 0x12000, scoped, tag = 'internal scratch']
  %s0 = inlined_call_operand.vmem [shape: f32[16,128], index: 0, kind: input, shape index: {}]
  %s1 = inlined_call_operand.vmem [shape: f32[16,128], index: 1, kind: input, shape index: {}]
  %s2 = inlined_call_operand.vmem [shape: f32[1,3,8,128], index: 2, kind: output, shape index: {}]
  %s3 = sld [smem:[#allocation0]]
  $region30: #{focal_tversky_loss.1} parent=0
    _
  %s5 = ssub.s32 1, %s3
  %s6 = scalar_select 0, %s5, %s3
  // Predicated region
  $region2: #{focal_tversky_loss.1} parent=0 // pred_check
    _
  $region3: #{focal_tversky_loss.1} parent=0 // pred_check_branch
    %8 = sbr.rel (0) target = $region5
  $region4: #{focal_tversky_loss.1} parent=0 // pred_region
    %s9 = sadd.s32 0, 0
    %p10 = scmp.lt.s32.totalorder %s9, 0
    %s11 = scalar_select %p10, %s9, 0
    %s12 = smul.u32 2, %s11
    %p13 = scmp.lt.s32.totalorder %s12, 1
    %s14 = scalar_select %p13, %s12, 1
    %s15 = smul.addr %s14, 8
    %s16 = scalar_lea.vmem %s0, %s15
    %s17 = sadd.s32 0, 0
    %p18 = scmp.lt.s32.totalorder %s17, 0
    %s19 = scalar_select %p18, %s17, 0
    %s20 = smul.u32 2, %s19
  $region5: #{focal_tversky_loss.1} parent=0 // pred_fallthru
    _
  // Predicated region
  $region6: #{focal_tversky_loss.1} parent=0 // pred_check
    _
  $region7: #{focal_tversky_loss.1} parent=0 // pred_check_branch
    %22 = sbr.rel (0) target = $region9
  $region8: #{focal_tversky_loss.1} parent=0 // pred_region
    %s23 = sadd.s32 0, 0
    %p24 = scmp.lt.s32.totalorder %s23, 0
    %s25 = scalar_select %p24, %s23, 0
    %s26 = smul.u32 2, %s25
    %p27 = scmp.lt.s32.totalorder %s26, 1
    %s28 = scalar_select %p27, %s26, 1
    %s29 = smul.addr %s28, 8
    %s30 = scalar_lea.vmem %s1, %s29
    %s31 = sadd.s32 0, 0
    %p32 = scmp.lt.s32.totalorder %s31, 0
    %s33 = scalar_select %p32, %s31, 0
    %s34 = smul.u32 2, %s33
  $region9: #{focal_tversky_loss.1} parent=0 // pred_fallthru
    _
  %s35 = sadd.s32 0, 0
  %p36 = scmp.lt.s32.totalorder %s35, 0
  %s37 = scalar_select %p36, %s35, 0
  %s38 = smul.u32 2, %s37
  %p39 = scmp.lt.s32.totalorder %s38, 1
  %s40 = scalar_select %p39, %s38, 1
  %s41 = smul.addr %s40, 8
  %s42 = scalar_lea.vmem %s0, %s41
  %s43 = sadd.s32 0, 0
  %p44 = scmp.lt.s32.totalorder %s43, 0
  %s45 = scalar_select %p44, %s43, 0
  %s46 = smul.u32 2, %s45
  %p47 = scmp.lt.s32.totalorder %s46, 1
  %s48 = scalar_select %p47, %s46, 1
  %s49 = smul.addr %s48, 8
  %s50 = scalar_lea.vmem %s1, %s49
  %s51 = sadd.s32 0, 0
  %p52 = scmp.lt.s32.totalorder %s51, 0
  %s53 = scalar_select %p52, %s51, 0
  %s54 = smul.u32 2, %s53
  %p55 = scmp.lt.s32.totalorder %s54, 1
  %s56 = scalar_select %p55, %s54, 1
  %s57 = smul.addr %s56, 8
  %s58 = scalar_lea.vmem %s0, %s57
  %s59 = sadd.s32 0, 0
  %p60 = scmp.lt.s32.totalorder %s59, 0
  %s61 = scalar_select %p60, %s59, 0
  %s62 = smul.u32 2, %s61
  %s63 = sadd.s32 0, 0
  %p64 = scmp.lt.s32.totalorder %s63, 0
  %s65 = scalar_select %p64, %s63, 0
  %s66 = smul.u32 2, %s65
  %p67 = scmp.lt.s32.totalorder %s66, 1
  %s68 = scalar_select %p67, %s66, 1
  %s69 = smul.addr %s68, 8
  %s70 = scalar_lea.vmem %s1, %s69
  %s71 = sadd.s32 0, 0
  %p72 = scmp.lt.s32.totalorder %s71, 0
  %s73 = scalar_select %p72, %s71, 0
  %s74 = smul.u32 2, %s73
  %p75 = scmp.eq.s32.totalorder 0, 0
  // Predicated region
  $region10: #{focal_tversky_loss.1} parent=0 // pred_check
    %p76 = pneg %p75
  $region11: #{focal_tversky_loss.1} parent=0 // pred_check_branch
    %78 = sbr.rel (%p76) target = $region13
  $region12: #{focal_tversky_loss.1} parent=0 // pred_region
    %79 = vst [vmem:[%s2] sm:$0xff] 0.0
    %80 = vst [vmem:[%s2 + $0x8] sm:$0xff] 0.0
    %81 = vst [vmem:[%s2 + $0x10] sm:$0xff] 0.0
  $region13: #{focal_tversky_loss.1} parent=0 // pred_fallthru
    _
  %s82 = sadd.s32 0, 0
  %s83 = smul.u32 %s82, 16
  %s84 = sadd.s32 %s83, 16
  %p85 = scmp.le.s32.totalorder %s84, 16
  // Predicated region
  $region14: #{focal_tversky_loss.1} parent=0 // pred_check
    %p86 = pneg %p85
  $region15: #{focal_tversky_loss.1} parent=0 // pred_check_branch
    %88 = sbr.rel (%p86) target = $region17
  $region16: #{focal_tversky_loss.1} parent=0 // pred_region
    %v89 = vld [vmem:[%s58] sm:$0xff]
    %v90 = vld [vmem:[%s58 + $0x8] sm:$0xff]
    %v91 = vld [vmem:[%s70] sm:$0xff]
    %v92 = vld [vmem:[%s70 + $0x8] sm:$0xff]
    %v93 = vmul.f32 %v89, 0.5
    %v94 = vmul.f32 %v90, 0.5
    %v95 = vtanh.pop %v93
    %v96 = vtanh.pop %v94
    %v97 = vmul.f32 %v95, 0.5
    %v98 = vmul.f32 %v96, 0.5
    %v99 = vadd.f32 %v97, 0.5
    %v100 = vadd.f32 %v98, 0.5
    %v101 = vmul.f32 %v99, %v91
    %v102 = vmul.f32 %v100, %v92
    %v103 = vadd.f32 %v101, %v102
    %v104 = vadd.f32 %v103, 0.0
    %v105 = vadd.f32 %v99, %v100
    %v106 = vadd.f32 %v105, 0.0
    %v107 = vadd.f32 %v91, %v92
    %v108 = vadd.f32 %v107, 0.0
    %v109 = vld [vmem:[%s2] sm:$0xff]
    %v110 = vadd.f32 %v109, %v104
    %111 = vst [vmem:[%s2] sm:$0xff] %v110
    %s112 = scalar_lea.vmem %s2, 8
    %v113 = vld [vmem:[%s112] sm:$0xff]
    %v114 = vadd.f32 %v113, %v106
    %115 = vst [vmem:[%s112] sm:$0xff] %v114
    %s116 = scalar_lea.vmem %s2, 16
    %v117 = vld [vmem:[%s116] sm:$0xff]
    %v118 = vadd.f32 %v117, %v108
    %119 = vst [vmem:[%s116] sm:$0xff] %v118
  $region17: #{focal_tversky_loss.1} parent=0 // pred_fallthru
    _
  %p120 = scmp.gt.s32.totalorder %s84, 16
  // Predicated region
  $region18: #{focal_tversky_loss.1} parent=0 // pred_check
    %p121 = pneg %p120
  $region19: #{focal_tversky_loss.1} parent=0 // pred_check_branch
    %123 = sbr.rel (%p121) target = $region21
  $region20: #{focal_tversky_loss.1} parent=0 // pred_region
    %v124 = vld [vmem:[%s58] sm:$0xff]
    %v125 = vld [vmem:[%s58 + $0x8] sm:$0xff]
    %v126 = vld [vmem:[%s70] sm:$0xff]
    %v127 = vld [vmem:[%s70 + $0x8] sm:$0xff]
    %v128 = vmul.f32 %v124, 0.5
    %v129 = vmul.f32 %v125, 0.5
    %v130 = vtanh.pop %v128
    %v131 = vtanh.pop %v129
    %v132 = vmul.f32 %v130, 0.5
    %v133 = vmul.f32 %v131, 0.5
    %v134 = vadd.f32 %v132, 0.5
    %v135 = vadd.f32 %v133, 0.5
    %v136 = vlaneseq
    %v137 = vshrl.u32 %v136, 7
    %v138 = vadd.s32 %v137, 8
    %v139 = vstv %s83
    %v140 = vadd.s32 %v139, %v137
    %v141 = vadd.s32 %v139, %v138
    %vm142 = vcmp.lt.s32.totalorder %v140, 16
    %vm143 = vcmp.lt.s32.totalorder %v141, 16
    %v144 = vsel %vm142, %v134, 0.0
    %v145 = vsel %vm143, %v135, 0.0
    %v146 = vsel %vm142, %v126, 0.0
    %v147 = vsel %vm143, %v127, 0.0
    %v148 = vmul.f32 %v144, %v146
    %v149 = vmul.f32 %v145, %v147
    %v150 = vadd.f32 %v148, %v149
    %v151 = vadd.f32 %v150, 0.0
    %v152 = vadd.f32 %v144, %v145
    %v153 = vadd.f32 %v152, 0.0
    %v154 = vadd.f32 %v146, %v147
    %v155 = vadd.f32 %v154, 0.0
    %v156 = vld [vmem:[%s2] sm:$0xff]
    %v157 = vadd.f32 %v156, %v151
    %158 = vst [vmem:[%s2] sm:$0xff] %v157
    %s159 = scalar_lea.vmem %s2, 8
    %v160 = vld [vmem:[%s159] sm:$0xff]
    %v161 = vadd.f32 %v160, %v153
    %162 = vst [vmem:[%s159] sm:$0xff] %v161
    %s163 = scalar_lea.vmem %s2, 16
    %v164 = vld [vmem:[%s163] sm:$0xff]
    %v165 = vadd.f32 %v164, %v155
    %166 = vst [vmem:[%s163] sm:$0xff] %v165
  $region21: #{focal_tversky_loss.1} parent=0 // pred_fallthru
    _
  // Predicated region
  $region22: #{focal_tversky_loss.1} parent=0 // pred_check
    _
  $region23: #{focal_tversky_loss.1} parent=0 // pred_check_branch
    %168 = sbr.rel (0) target = $region25
  $region24: #{focal_tversky_loss.1} parent=0 // pred_region
    _
  $region25: #{focal_tversky_loss.1} parent=0 // pred_fallthru
    _
  // Predicated region
  $region26: #{focal_tversky_loss.1} parent=0 // pred_check
    _
  $region27: #{focal_tversky_loss.1} parent=0 // pred_check_branch
    %170 = sbr.rel (0) target = $region29
  $region28: #{focal_tversky_loss.1} parent=0 // pred_region
    _
  $region29: #{focal_tversky_loss.1} parent=0 // pred_fallthru
    _

</llo_original>
